<compile_context>
chip_gen: v6e
topology: v6e:2x2x1
jax: 0.10.0
libtpu: 0.0.40
codegen_flags: <defaults>
</compile_context>

<pallas_src>
import jax
import jax.numpy as jnp
from jax import lax
from jax.experimental import pallas as pl
from jax.experimental.pallas import tpu as pltpu

BN_EPS = 1e-5
K_MAX = 7          # shared receptive field (the k7 branch)
PAD_MAX = 3        # shared left padding

# (name, (kernel, stride, padding)) -- matches the PyTorch module.
_BRANCHES = (("k2", (2, 2, 1)), ("k3", (3, 2, 1)),
             ("k5", (5, 2, 2)), ("k7", (7, 2, 3)))


def _fused_conv_bn_relu_kernel(p_ref, w_ref, prm_ref, rowv_ref,
                               o_ref, s1_ref, s2_ref):
    """p_ref:[tile_r, Cin*7]   w_ref:[Cin*7, C_pad]
    prm_ref:[4, C_pad] rows = (gamma, beta, 1/count, is_k2_col)
    rowv_ref:[tile_r, 1] row validity for the k>=3 branches
    o_ref:[tile_r, C_pad]
    s1/s2:[1, C_pad] scratch: (sum, sumsq) in pass 0 -> (scale, shift) in pass 1.
    """
    pass_id = pl.program_id(0)
    rt = pl.program_id(1)

    # Conv1d for all branches at once (zero-padded taps/columns in W).
    y = jnp.dot(p_ref[...], w_ref[...], preferred_element_type=jnp.float32)

    @pl.when(pass_id == 0)
    def _accumulate():
        @pl.when(rt == 0)
        def _init():
            s1_ref[...] = jnp.zeros_like(s1_ref)
            s2_ref[...] = jnp.zeros_like(s2_ref)

        # k2 columns use every row; k>=3 columns exclude the trailing time
        # step that only the k2 branch produces (and zero row padding is
        # harmless: its y is exactly 0).
        colk2 = prm_ref[3:4, :]
        mask = colk2 + (1.0 - colk2) * rowv_ref[...]        # [tile_r, C_pad]
        ym = y * mask
        s1_ref[...] += jnp.sum(ym, axis=0, keepdims=True)
        s2_ref[...] += jnp.sum(ym * y, axis=0, keepdims=True)

    @pl.when(pass_id == 1)
    def _apply():
        @pl.when(rt == 0)
        def _finalize():
            # Fold BN into one FMA: scale = gamma*rsqrt(var+eps),
            # shift = beta - mean*scale. Computed once, reused for all tiles.
            inv_cnt = prm_ref[2:3, :]
            mean = s1_ref[...] * inv_cnt
            var = jnp.maximum(s2_ref[...] * inv_cnt - mean * mean, 0.0)
            scale = prm_ref[0:1, :] * lax.rsqrt(var + BN_EPS)
            s1_ref[...] = scale
            s2_ref[...] = prm_ref[1:2, :] - mean * scale

        o_ref[...] = jnp.maximum(y * s1_ref[...] + s2_ref[...], 0.0
                                 ).astype(o_ref.dtype)


def inception1d_block_pallas(x, params, *, tile_r=512):
    """x: [N, C_in, L] f32; params[name] = (w [Cout, C_in, k], gamma, beta).
    Returns [N, channel_k2 + 3*channel_k3, L_out] (conv + batch-stat BN + ReLU
    per branch, concatenated along channels)."""
    N, C_in, L = x.shape
    l_outs = {n: (L + 2 * p - k) // s + 1 for n, (k, s, p) in _BRANCHES}
    T = l_outs["k2"]            # k2 has the longest output (>= the others)
    L_OTH = l_outs["k3"]        # k3/k5/k7 share this length (T or T-1)

    # --- shared im2col: window K=7, stride 2, left pad 3 ---
    pad_right = max(2 * T + 2 - L, 0)       # need original index 2*(T-1)+3
    xp = jnp.pad(x, ((0, 0), (0, 0), (PAD_MAX, pad_right)))
    taps = [xp[:, :, t:t + 2 * T - 1:2] for t in range(K_MAX)]   # [N, C_in, T] each
    patches = jnp.stack(taps, axis=-1)                  # [N, C_in, T, 7]
    patches = jnp.transpose(patches, (0, 2, 1, 3))      # [N, T, C_in, 7]
    patches = patches.reshape(N * T, C_in * K_MAX).astype(jnp.float32)

    # --- fuse all branch weights into one lane-padded [Cin*7, c_pad] matrix ---
    w_cols, gammas, betas, inv_cnts, couts = [], [], [], [], []
    for name, (k, s, p) in _BRANCHES:
        w, g, b = params[name]
        off = PAD_MAX - p                               # tap offset in the 7-window
        wk = jnp.pad(w, ((0, 0), (0, 0), (off, K_MAX - k - off)))  # [Cout, C_in, 7]
        w_cols.append(wk.reshape(w.shape[0], C_in * K_MAX).T)
        gammas.append(g)
        betas.append(b)
        inv_cnts.append(jnp.full((w.shape[0],), 1.0 / (N * l_outs[name]), jnp.float32))
        couts.append(w.shape[0])
    c_total = sum(couts)
    c_k2 = couts[0]
    c_pad = max(128, -(-c_total // 128) * 128)          # lane-dense output width

    w2d = jnp.pad(jnp.concatenate(w_cols, axis=1),
                  ((0, 0), (0, c_pad - c_total))).astype(jnp.float32)
    gamma = jnp.pad(jnp.concatenate(gammas), (0, c_pad - c_total))
    beta = jnp.pad(jnp.concatenate(betas), (0, c_pad - c_total))
    inv_cnt = jnp.pad(jnp.concatenate(inv_cnts), (0, c_pad - c_total),
                      constant_values=1.0 / (N * L_OTH))
    is_k2_col = (jnp.arange(c_pad) < c_k2).astype(jnp.float32)
    prm = jnp.stack([gamma, beta, inv_cnt, is_k2_col]).astype(jnp.float32)  # [4, c_pad]

    # --- row tiling ---
    R = N * T
    tile_r = max(8, min(int(tile_r), -(-R // 8) * 8) // 8 * 8)
    n_tiles = -(-R // tile_r)
    R_pad = n_tiles * tile_r
    patches = jnp.pad(patches, ((0, R_pad - R), (0, 0)))
    rid = jnp.arange(R_pad)
    rowv = ((rid < R) & (rid % T < L_OTH)).astype(jnp.float32).reshape(R_pad, 1)

    cink = C_in * K_MAX
    out = pl.pallas_call(
        _fused_conv_bn_relu_kernel,
        out_shape=jax.ShapeDtypeStruct((R_pad, c_pad), jnp.float32),
        grid_spec=pltpu.PrefetchScalarGridSpec(
            num_scalar_prefetch=0,
            grid=(2, n_tiles),                          # (BN pass, row tile)
            in_specs=[
                pl.BlockSpec((tile_r, cink), lambda p, r: (r, 0)),   # patches
                pl.BlockSpec((cink, c_pad), lambda p, r: (0, 0)),    # fused weights
                pl.BlockSpec((4, c_pad), lambda p, r: (0, 0)),       # gamma/beta/1/cnt/colmask
                pl.BlockSpec((tile_r, 1), lambda p, r: (r, 0)),      # row validity
            ],
            # Pass 0 keeps the output block pinned at 0 (never stored), so no
            # garbage HBM writebacks; pass 1 walks and writes the row tiles.
            out_specs=pl.BlockSpec((tile_r, c_pad), lambda p, r: (r * p, 0)),
            scratch_shapes=[pltpu.VMEM((1, c_pad), jnp.float32),
                            pltpu.VMEM((1, c_pad), jnp.float32)],
        ),
        compiler_params=pltpu.CompilerParams(
            # Row axis must stay "arbitrary": BN stats accumulate across row
            # tiles in scratch. TODO(synk): per-core partial stats + cross-core
            # reduce would allow "parallel" here to use v7x's 2 TensorCores.
            dimension_semantics=("arbitrary", "arbitrary"),
            vmem_limit_bytes=32 * 1024 * 1024,
        ),
    )(patches, w2d, prm, rowv)

    # Single reshape/transpose back to NCL; drop lane/row padding and the
    # trailing step only the k2 branch produced (PyTorch truncates it too).
    y = out[:R, :c_total].reshape(N, T, c_total)
    return jnp.transpose(y, (0, 2, 1))[:, :, :L_OTH]


def init_params(key, channel_in, channel_k2, channel_k3):
    params = {}
    specs = {"k2": (channel_k2, 2), "k3": (channel_k3, 3),
             "k5": (channel_k3, 5), "k7": (channel_k3, 7)}
    for name, (cout, k) in specs.items():
        key, kw, kg, kb = jax.random.split(key, 4)
        fan_in = channel_in * k
        w = jax.random.normal(kw, (cout, channel_in, k), jnp.float32) / jnp.sqrt(fan_in)
        g = 1.0 + 0.1 * jax.random.normal(kg, (cout,), jnp.float32)
        b = 0.1 * jax.random.normal(kb, (cout,), jnp.float32)
        params[name] = (w, g, b)
    return params


def _ref_branch(x, w, g, b, stride, padding):
    """Pure-JAX reference (lax conv + batch-stat BN + ReLU)."""
    y = lax.conv_general_dilated(
        x, w, (stride,), [(padding, padding)],
        dimension_numbers=("NCH", "OIH", "NCH"))
    mean = jnp.mean(y, axis=(0, 2), keepdims=True)
    var = jnp.mean((y - mean) ** 2, axis=(0, 2), keepdims=True)
    yn = (y - mean) * lax.rsqrt(var + BN_EPS) * g.reshape(1, -1, 1) + b.reshape(1, -1, 1)
    return jnp.maximum(yn, 0.0)


if __name__ == "__main__":
    key = jax.random.PRNGKey(0)
    N, C_in, L = 2, 4, 16
    channel_k2, channel_k3 = 6, 5

    kx, kp = jax.random.split(key)
    x = jax.random.normal(kx, (N, C_in, L), jnp.float32)
    params = init_params(kp, C_in, channel_k2, channel_k3)

    # Small tile so the demo exercises multiple row tiles (multi-tile two-pass BN).
    out = inception1d_block_pallas(x, params, tile_r=8)
    out = jax.block_until_ready(out)

    # Pure-JAX reference: per-branch conv/BN/ReLU, truncate k2, concat.
    ref = []
    for name, (k, s, p) in _BRANCHES:
        w, g, b = params[name]
        ref.append(_ref_branch(x, w, g, b, s, p))
    if ref[0].shape[-1] > ref[1].shape[-1]:
        ref[0] = ref[0][:, :, :-1]
    ref = jnp.concatenate(ref, axis=1)

    assert out.shape == (N, channel_k2 + 3 * channel_k3, L // 2), out.shape
    assert jnp.allclose(out, ref, atol=1e-4, rtol=1e-4), \
        float(jnp.max(jnp.abs(out - ref)))
    print("KERNEL_OK")
</pallas_src>

<mosaic_0001>
module attributes {stable_mosaic.version = 11 : i64} {
  func.func @_fused_conv_bn_relu_kernel(%arg0: i32, %arg1: i32, %arg2: memref<8x28xf32, #tpu.memory_space<vmem>>, %arg3: memref<28x128xf32, #tpu.memory_space<vmem>>, %arg4: memref<4x128xf32, #tpu.memory_space<vmem>>, %arg5: memref<8x1xf32, #tpu.memory_space<vmem>>, %arg6: memref<8x128xf32, #tpu.memory_space<vmem>>, %arg7: memref<1x128xf32, #tpu.memory_space<vmem>>, %arg8: memref<1x128xf32, #tpu.memory_space<vmem>>) attributes {dimension_semantics = [#tpu.dimension_semantics<arbitrary>, #tpu.dimension_semantics<arbitrary>], iteration_bounds = array<i64: 2, 3>, scalar_prefetch = 0 : i64, scratch_operands = 2 : i64, tpu.core_type = #tpu.core_type<tc>, window_params = [{transform_indices = @transform_0, window_bounds = array<i64: 8, 28>}, {pipeline_mode = #tpu.pipeline_mode<synchronous>, transform_indices = @transform_1, window_bounds = array<i64: 28, 128>}, {pipeline_mode = #tpu.pipeline_mode<synchronous>, transform_indices = @transform_2, window_bounds = array<i64: 4, 128>}, {transform_indices = @transform_3, window_bounds = array<i64: 8, 1>}, {transform_indices = @transform_4, window_bounds = array<i64: 8, 128>}]} {
    %c0 = arith.constant 0 : index
    %c0_0 = arith.constant 0 : index
    %0 = vector.load %arg2[%c0, %c0_0] : memref<8x28xf32, #tpu.memory_space<vmem>>, vector<8x28xf32>
    %c0_1 = arith.constant 0 : index
    %c0_2 = arith.constant 0 : index
    %1 = vector.load %arg3[%c0_1, %c0_2] : memref<28x128xf32, #tpu.memory_space<vmem>>, vector<28x128xf32>
    %cst = arith.constant dense<0.000000e+00> : vector<8x128xf32>
    %2 = tpu.matmul %0, %1, %cst {dimension_numbers = #tpu.dot_dimension_numbers<[1], [0], [0], [1], [0, 0, 1, 1], [], []>} : vector<8x28xf32>, vector<28x128xf32>, vector<8x128xf32> -> vector<8x128xf32>
    %c0_i32 = arith.constant 0 : i32
    %3 = arith.cmpi eq, %arg0, %c0_i32 : i32
    %4 = arith.extui %3 : i1 to i32
    %c0_i32_3 = arith.constant 0 : i32
    %5 = arith.cmpi ne, %4, %c0_i32_3 : i32
    scf.if %5 {
      %c0_i32_5 = arith.constant 0 : i32
      %9 = arith.cmpi eq, %arg1, %c0_i32_5 : i32
      %10 = arith.extui %9 : i1 to i32
      %c0_i32_6 = arith.constant 0 : i32
      %11 = arith.cmpi ne, %10, %c0_i32_6 : i32
      scf.if %11 {
        %cst_21 = arith.constant 0.000000e+00 : f32
        %33 = vector.broadcast %cst_21 : f32 to vector<1x128xf32>
        %c0_22 = arith.constant 0 : index
        %c0_23 = arith.constant 0 : index
        %34 = vector.load %arg7[%c0_22, %c0_23] : memref<1x128xf32, #tpu.memory_space<vmem>>, vector<1x128xf32>
        tpu.vector_store %arg7[%c0_22, %c0_23], %33 {strides = array<i32>} : memref<1x128xf32, #tpu.memory_space<vmem>>, vector<1x128xf32>,
        %cst_24 = arith.constant 0.000000e+00 : f32
        %35 = vector.broadcast %cst_24 : f32 to vector<1x128xf32>
        %c0_25 = arith.constant 0 : index
        %c0_26 = arith.constant 0 : index
        %36 = vector.load %arg8[%c0_25, %c0_26] : memref<1x128xf32, #tpu.memory_space<vmem>>, vector<1x128xf32>
        tpu.vector_store %arg8[%c0_25, %c0_26], %35 {strides = array<i32>} : memref<1x128xf32, #tpu.memory_space<vmem>>, vector<1x128xf32>,
      } else {
      }
      %c3 = arith.constant 3 : index
      %c0_7 = arith.constant 0 : index
      %12 = vector.load %arg4[%c3, %c0_7] : memref<4x128xf32, #tpu.memory_space<vmem>>, vector<1x128xf32>
      %cst_8 = arith.constant 1.000000e+00 : f32
      %13 = vector.broadcast %cst_8 : f32 to vector<1x128xf32>
      %14 = arith.subf %13, %12 : vector<1x128xf32>
      %c0_9 = arith.constant 0 : index
      %c0_10 = arith.constant 0 : index
      %15 = vector.load %arg5[%c0_9, %c0_10] : memref<8x1xf32, #tpu.memory_space<vmem>>, vector<8x1xf32>
      %16 = vector.broadcast %14 : vector<1x128xf32> to vector<8x128xf32>
      %17 = vector.broadcast %15 : vector<8x1xf32> to vector<8x128xf32>
      %18 = arith.mulf %16, %17 : vector<8x128xf32>
      %19 = vector.broadcast %12 : vector<1x128xf32> to vector<8x128xf32>
      %20 = arith.addf %19, %18 : vector<8x128xf32>
      %21 = arith.mulf %2, %20 : vector<8x128xf32>
      %c0_11 = arith.constant 0 : index
      %c0_12 = arith.constant 0 : index
      %22 = vector.load %arg7[%c0_11, %c0_12] : memref<1x128xf32, #tpu.memory_space<vmem>>, vector<1x128xf32>
      %cst_13 = arith.constant dense<0.000000e+00> : vector<128xf32>
      %23 = vector.multi_reduction <add>, %21, %cst_13 [0] : vector<8x128xf32> to vector<128xf32>
      %24 = vector.shape_cast %23 : vector<128xf32> to vector<1x128xf32>
      %25 = arith.addf %22, %24 : vector<1x128xf32>
      %c0_14 = arith.constant 0 : index
      %c0_15 = arith.constant 0 : index
      %26 = vector.load %arg7[%c0_14, %c0_15] : memref<1x128xf32, #tpu.memory_space<vmem>>, vector<1x128xf32>
      tpu.vector_store %arg7[%c0_14, %c0_15], %25 {strides = array<i32>} : memref<1x128xf32, #tpu.memory_space<vmem>>, vector<1x128xf32>,
      %c0_16 = arith.constant 0 : index
      %c0_17 = arith.constant 0 : index
      %27 = vector.load %arg8[%c0_16, %c0_17] : memref<1x128xf32, #tpu.memory_space<vmem>>, vector<1x128xf32>
      %28 = arith.mulf %21, %2 : vector<8x128xf32>
      %cst_18 = arith.constant dense<0.000000e+00> : vector<128xf32>
      %29 = vector.multi_reduction <add>, %28, %cst_18 [0] : vector<8x128xf32> to vector<128xf32>
      %30 = vector.shape_cast %29 : vector<128xf32> to vector<1x128xf32>
      %31 = arith.addf %27, %30 : vector<1x128xf32>
      %c0_19 = arith.constant 0 : index
      %c0_20 = arith.constant 0 : index
      %32 = vector.load %arg8[%c0_19, %c0_20] : memref<1x128xf32, #tpu.memory_space<vmem>>, vector<1x128xf32>
      tpu.vector_store %arg8[%c0_19, %c0_20], %31 {strides = array<i32>} : memref<1x128xf32, #tpu.memory_space<vmem>>, vector<1x128xf32>,
    } else {
    }
    %c1_i32 = arith.constant 1 : i32
    %6 = arith.cmpi eq, %arg0, %c1_i32 : i32
    %7 = arith.extui %6 : i1 to i32
    %c0_i32_4 = arith.constant 0 : i32
    %8 = arith.cmpi ne, %7, %c0_i32_4 : i32
    scf.if %8 {
      %c0_i32_5 = arith.constant 0 : i32
      %9 = arith.cmpi eq, %arg1, %c0_i32_5 : i32
      %10 = arith.extui %9 : i1 to i32
      %c0_i32_6 = arith.constant 0 : i32
      %11 = arith.cmpi ne, %10, %c0_i32_6 : i32
      scf.if %11 {
        %c2 = arith.constant 2 : index
        %c0_14 = arith.constant 0 : index
        %21 = vector.load %arg4[%c2, %c0_14] : memref<4x128xf32, #tpu.memory_space<vmem>>, vector<1x128xf32>
        %c0_15 = arith.constant 0 : index
        %c0_16 = arith.constant 0 : index
        %22 = vector.load %arg7[%c0_15, %c0_16] : memref<1x128xf32, #tpu.memory_space<vmem>>, vector<1x128xf32>
        %23 = arith.mulf %22, %21 : vector<1x128xf32>
        %c0_17 = arith.constant 0 : index
        %c0_18 = arith.constant 0 : index
        %24 = vector.load %arg8[%c0_17, %c0_18] : memref<1x128xf32, #tpu.memory_space<vmem>>, vector<1x128xf32>
        %25 = arith.mulf %24, %21 : vector<1x128xf32>
        %26 = arith.mulf %23, %23 : vector<1x128xf32>
        %27 = arith.subf %25, %26 : vector<1x128xf32>
        %cst_19 = arith.constant 0.000000e+00 : f32
        %28 = vector.broadcast %cst_19 : f32 to vector<1x128xf32>
        %29 = arith.maximumf %27, %28 : vector<1x128xf32>
        %c0_20 = arith.constant 0 : index
        %c0_21 = arith.constant 0 : index
        %30 = vector.load %arg4[%c0_20, %c0_21] : memref<4x128xf32, #tpu.memory_space<vmem>>, vector<1x128xf32>
        %cst_22 = arith.constant 9.99999974E-6 : f32
        %31 = vector.broadcast %cst_22 : f32 to vector<1x128xf32>
        %32 = arith.addf %29, %31 : vector<1x128xf32>
        %33 = math.rsqrt %32 : vector<1x128xf32>
        %34 = arith.mulf %30, %33 : vector<1x128xf32>
        %c0_23 = arith.constant 0 : index
        %c0_24 = arith.constant 0 : index
        %35 = vector.load %arg7[%c0_23, %c0_24] : memref<1x128xf32, #tpu.memory_space<vmem>>, vector<1x128xf32>
        tpu.vector_store %arg7[%c0_23, %c0_24], %34 {strides = array<i32>} : memref<1x128xf32, #tpu.memory_space<vmem>>, vector<1x128xf32>,
        %c1 = arith.constant 1 : index
        %c0_25 = arith.constant 0 : index
        %36 = vector.load %arg4[%c1, %c0_25] : memref<4x128xf32, #tpu.memory_space<vmem>>, vector<1x128xf32>
        %37 = arith.mulf %23, %34 : vector<1x128xf32>
        %38 = arith.subf %36, %37 : vector<1x128xf32>
        %c0_26 = arith.constant 0 : index
        %c0_27 = arith.constant 0 : index
        %39 = vector.load %arg8[%c0_26, %c0_27] : memref<1x128xf32, #tpu.memory_space<vmem>>, vector<1x128xf32>
        tpu.vector_store %arg8[%c0_26, %c0_27], %38 {strides = array<i32>} : memref<1x128xf32, #tpu.memory_space<vmem>>, vector<1x128xf32>,
      } else {
      }
      %c0_7 = arith.constant 0 : index
      %c0_8 = arith.constant 0 : index
      %12 = vector.load %arg7[%c0_7, %c0_8] : memref<1x128xf32, #tpu.memory_space<vmem>>, vector<1x128xf32>
      %13 = vector.broadcast %12 : vector<1x128xf32> to vector<8x128xf32>
      %14 = arith.mulf %2, %13 : vector<8x128xf32>
      %c0_9 = arith.constant 0 : index
      %c0_10 = arith.constant 0 : index
      %15 = vector.load %arg8[%c0_9, %c0_10] : memref<1x128xf32, #tpu.memory_space<vmem>>, vector<1x128xf32>
      %16 = vector.broadcast %15 : vector<1x128xf32> to vector<8x128xf32>
      %17 = arith.addf %14, %16 : vector<8x128xf32>
      %cst_11 = arith.constant 0.000000e+00 : f32
      %18 = vector.broadcast %cst_11 : f32 to vector<8x128xf32>
      %19 = arith.maximumf %17, %18 : vector<8x128xf32>
      %c0_12 = arith.constant 0 : index
      %c0_13 = arith.constant 0 : index
      %20 = vector.load %arg6[%c0_12, %c0_13] : memref<8x128xf32, #tpu.memory_space<vmem>>, vector<8x128xf32>
      tpu.vector_store %arg6[%c0_12, %c0_13], %19 {strides = array<i32>} : memref<8x128xf32, #tpu.memory_space<vmem>>, vector<8x128xf32>,
    } else {
    }
    return
  }
  func.func @transform_0(%arg0: i32, %arg1: i32) -> (i32, i32) {
    %c0_i32 = arith.constant 0 : i32
    %c0_i32_0 = arith.constant 0 : i32
    return %arg1, %c0_i32 : i32, i32
  }
  func.func @transform_1(%arg0: i32, %arg1: i32) -> (i32, i32) {
    %c0_i32 = arith.constant 0 : i32
    %c0_i32_0 = arith.constant 0 : i32
    %c0_i32_1 = arith.constant 0 : i32
    return %c0_i32, %c0_i32_0 : i32, i32
  }
  func.func @transform_2(%arg0: i32, %arg1: i32) -> (i32, i32) {
    %c0_i32 = arith.constant 0 : i32
    %c0_i32_0 = arith.constant 0 : i32
    %c0_i32_1 = arith.constant 0 : i32
    return %c0_i32, %c0_i32_0 : i32, i32
  }
  func.func @transform_3(%arg0: i32, %arg1: i32) -> (i32, i32) {
    %c0_i32 = arith.constant 0 : i32
    %c0_i32_0 = arith.constant 0 : i32
    return %arg1, %c0_i32 : i32, i32
  }
  func.func @transform_4(%arg0: i32, %arg1: i32) -> (i32, i32) {
    %0 = arith.muli %arg1, %arg0 : i32
    %c0_i32 = arith.constant 0 : i32
    %c0_i32_0 = arith.constant 0 : i32
    return %0, %c0_i32 : i32, i32
  }
}

</mosaic_0001>

<llo_original>
// kernel: tpu_custom_call.1
$region0: #{tpu_custom_call.1}
  #allocation0 [shape = 'u32[]', space=smem, size = 0x4, offset = 0x4, fixed_abs, tag = 'smem constant byte address 0x4 - core index']
  #allocation1 [shape = 'u32[144,128]{1,0:T(1,128)}', space=vmem, size = 0x12000, scoped, tag = 'internal scratch']
  #allocation2 [shape = 'f32[1,128]{1,0:T(1,128)}', space=vmem, size = 0x200, scoped, tag = 'scratch operand']
  #allocation3 [shape = 'f32[1,128]{1,0:T(1,128)}', space=vmem, size = 0x200, scoped, tag = 'scratch operand']
  %s0 = inlined_call_operand.vmem [shape: f32[24,28], index: 0, kind: input, shape index: {}]
  %s1 = inlined_call_operand.hbm [shape: f32[28,128], index: 1, kind: input, shape index: {}]
  %s2 = inlined_call_operand.vmem [shape: f32[4,128], index: 2, kind: input, shape index: {}]
  %s3 = inlined_call_operand.vmem [shape: f32[24,1], index: 3, kind: input, shape index: {}]
  %s4 = inlined_call_operand.hbm [shape: f32[24,128], index: 4, kind: output, shape index: {}]
  %s5 = sld [smem:[#allocation0]]
  $region69: #{tpu_custom_call.1} parent=0
    _
  %s7 = ssub.s32 1, %s5
  %s8 = scalar_select 0, %s7, %s5
  $region1: #{tpu_custom_call.1} parent=0
    #allocation4 [shape = 'u8[16384]{0}', space=vmem, size = 0x4000, scoped, tag = 'input window, operand 1, single buffered']
    #allocation5 [shape = 's32[2]{0}', space=sflag, size = 0x8, scoped, tag = 'scoped memory for tpu_custom_call.1']
    #allocation6 [shape = 's32[2]{0}', space=sflag, size = 0x8, scoped, tag = 'scoped memory for tpu_custom_call.1']
    #allocation7 [shape = 'u8[8192]{0}', space=vmem, size = 0x2000, scoped, tag = 'output window, operand 0']
    %9 = vsyncpa [#allocation5], 0
    %10 = vsyncpa [#allocation6], 0
    %s11 = scalar_lea.sflag [#allocation6], 1
    %12 = vsyncpa %s11, 0
    loop: start=0, step=1, limit=8
    $region2: #{tpu_custom_call.1} parent=1 // loop_pre_header
      _
    $region3: #{tpu_custom_call.1} parent=1 // loop_header
      %s14 = sphi 0, %s18
      %p15 = scmp.ge.s32.totalorder %s14, 8
      %s21 = sphi 0, %s33
      %s22 = sphi 0, %s29
      %s23 = sphi 0, %s21
      %s24 = sphi 0, %s22
      %s25 = sphi 0, %s23
      %s26 = sphi 0, %s24
      %s36 = sphi 0, %s38
      %s39 = sphi 0, %s36
      %s40 = sphi 0, %s39
      %s56 = sphi 0, %s40
      %s60 = sphi 0, %s60
      %s62 = sphi 0, %s60
      %s63 = sphi 0, %s62
      %s77 = sphi 0, %s63
      %s81 = sphi 0, %s81
      %s83 = sphi 0, %s81
      %s84 = sphi 0, %s83
      %s98 = sphi 0, %s84
      %s104 = sphi 0, %s106
      %s107 = sphi 0, %s104
      %s108 = sphi 0, %s107
      %s124 = sphi 0, %s108
      %s132 = sphi 0, %s134
      %s135 = sphi 0, %s132
      %s136 = sphi 0, %s135
      %s152 = sphi 0, %s136
    $region4: #{tpu_custom_call.1} parent=1 // loop_header_branch
      %17 = sbr.rel (%p15) target = $region8
    $region5: #{tpu_custom_call.1} parent=1 // loop_body
      %s19 = ssub.s32 %s14, 1
      %s20 = ssub.s32 %s14, 2
      %s27 = sadd.s32 1, %s22
      %p28 = scmp.ge.s32.totalorder %s27, 3
      %s29 = scalar_select %p28, 0, %s27
      %s30 = sadd.s32 1, %s21
      %s31 = scalar_select %p28, %s30, %s21
      %p32 = scmp.ge.s32.totalorder %s31, 2
      %s33 = scalar_select %p32, 0, %s31
      %s34 = ssub.s32 %s22, %s29
      %p35 = scmp.eq.s32.totalorder %s34, 0
      %s37 = sadd.s32 %s36, 1
      %s38 = scalar_select %p35, %s36, %s37
      %p41 = pneg %p35
      %p42 = scmp.eq.s32.totalorder %s14, 5
      %p43 = por %p41, %p42
      %p44 = scmp.ne.s32.totalorder %s36, %s39
      %p45 = scmp.eq.s32.totalorder %s14, 0
      %p46 = por %p44, %p45
      %p47 = scmp.ne.s32.totalorder %s36, %s39
      %p48 = scmp.eq.s32.totalorder %s19, 5
      %p49 = por %p47, %p48
      %p50 = scmp.ne.s32.totalorder %s39, %s40
      %p51 = scmp.eq.s32.totalorder %s19, 0
      %p52 = por %p50, %p51
      %p53 = scmp.ne.s32.totalorder %s39, %s40
      %p54 = scmp.eq.s32.totalorder %s20, 5
      %p55 = por %p53, %p54
      %p57 = scmp.ne.s32.totalorder %s40, %s56
      %p58 = scmp.eq.s32.totalorder %s20, 0
      %p59 = por %p57, %p58
      %s61 = sadd.s32 %s60, 1
      %p64 = scmp.eq.s32.totalorder %s14, 5
      %p65 = scmp.ne.s32.totalorder %s60, %s62
      %p66 = scmp.eq.s32.totalorder %s14, 0
      %p67 = por %p65, %p66
      %p68 = scmp.ne.s32.totalorder %s60, %s62
      %p69 = scmp.eq.s32.totalorder %s19, 5
      %p70 = por %p68, %p69
      %p71 = scmp.ne.s32.totalorder %s62, %s63
      %p72 = scmp.eq.s32.totalorder %s19, 0
      %p73 = por %p71, %p72
      %p74 = scmp.ne.s32.totalorder %s62, %s63
      %p75 = scmp.eq.s32.totalorder %s20, 5
      %p76 = por %p74, %p75
      %p78 = scmp.ne.s32.totalorder %s63, %s77
      %p79 = scmp.eq.s32.totalorder %s20, 0
      %p80 = por %p78, %p79
      %s82 = sadd.s32 %s81, 1
      %p85 = scmp.eq.s32.totalorder %s14, 5
      %p86 = scmp.ne.s32.totalorder %s81, %s83
      %p87 = scmp.eq.s32.totalorder %s14, 0
      %p88 = por %p86, %p87
      %p89 = scmp.ne.s32.totalorder %s81, %s83
      %p90 = scmp.eq.s32.totalorder %s19, 5
      %p91 = por %p89, %p90
      %p92 = scmp.ne.s32.totalorder %s83, %s84
      %p93 = scmp.eq.s32.totalorder %s19, 0
      %p94 = por %p92, %p93
      %p95 = scmp.ne.s32.totalorder %s83, %s84
      %p96 = scmp.eq.s32.totalorder %s20, 5
      %p97 = por %p95, %p96
      %p99 = scmp.ne.s32.totalorder %s84, %s98
      %p100 = scmp.eq.s32.totalorder %s20, 0
      %p101 = por %p99, %p100
      %s102 = ssub.s32 %s22, %s29
      %p103 = scmp.eq.s32.totalorder %s102, 0
      %s105 = sadd.s32 %s104, 1
      %s106 = scalar_select %p103, %s104, %s105
      %p109 = pneg %p103
      %p110 = scmp.eq.s32.totalorder %s14, 5
      %p111 = por %p109, %p110
      %p112 = scmp.ne.s32.totalorder %s104, %s107
      %p113 = scmp.eq.s32.totalorder %s14, 0
      %p114 = por %p112, %p113
      %p115 = scmp.ne.s32.totalorder %s104, %s107
      %p116 = scmp.eq.s32.totalorder %s19, 5
      %p117 = por %p115, %p116
      %p118 = scmp.ne.s32.totalorder %s107, %s108
      %p119 = scmp.eq.s32.totalorder %s19, 0
      %p120 = por %p118, %p119
      %p121 = scmp.ne.s32.totalorder %s107, %s108
      %p122 = scmp.eq.s32.totalorder %s20, 5
      %p123 = por %p121, %p122
      %p125 = scmp.ne.s32.totalorder %s108, %s124
      %p126 = scmp.eq.s32.totalorder %s20, 0
      %p127 = por %p125, %p126
      %s128 = smul.u32 %s22, %s21
      %s129 = smul.u32 %s29, %s33
      %s130 = ssub.s32 %s128, %s129
      %p131 = scmp.eq.s32.totalorder %s130, 0
      %s133 = sadd.s32 %s132, 1
      %s134 = scalar_select %p131, %s132, %s133
      %p137 = pneg %p131
      %p138 = scmp.eq.s32.totalorder %s14, 5
      %p139 = por %p137, %p138
      %p140 = scmp.ne.s32.totalorder %s132, %s135
      %p141 = scmp.eq.s32.totalorder %s14, 0
      %p142 = por %p140, %p141
      %p143 = scmp.ne.s32.totalorder %s132, %s135
      %p144 = scmp.eq.s32.totalorder %s19, 5
      %p145 = por %p143, %p144
      %p146 = scmp.ne.s32.totalorder %s135, %s136
      %p147 = scmp.eq.s32.totalorder %s19, 0
      %p148 = por %p146, %p147
      %p149 = scmp.ne.s32.totalorder %s135, %s136
      %p150 = scmp.eq.s32.totalorder %s20, 5
      %p151 = por %p149, %p150
      %p153 = scmp.ne.s32.totalorder %s136, %s152
      %p154 = scmp.eq.s32.totalorder %s20, 0
      %p155 = por %p153, %p154
      %p156 = scmp.le.s32.totalorder 1, %s14
      %p157 = scmp.lt.s32.totalorder %s14, 7
      %p158 = pnand %p156, %p157
      %p159 = pneg %p158
      // Predicated region
      $region9: #{tpu_custom_call.1} parent=5 // pred_check
        _
      $region10: #{tpu_custom_call.1} parent=5 // pred_check_branch
        %161 = sbr.rel (%p158) target = $region12
      $region11: #{tpu_custom_call.1} parent=5 // pred_region
        %s162 = ssub.s32 %s14, 1
        // Predicated region
        $region13: #{tpu_custom_call.1} parent=11 // pred_check
          %p163 = pneg %p73
        $region14: #{tpu_custom_call.1} parent=11 // pred_check_branch
          %165 = sbr.rel (%p163) target = $region16
        $region15: #{tpu_custom_call.1} parent=11 // pred_region
          %s167 = ssub.s32 512, 512
          %168 = vsyncadd [#allocation5], %s167
          %s169 = sshll.u32 [#allocation4], 4
          %s170 = int_to_ptr.vmem [resolvable:$true] %s169
          %175 = dma.hbm_to_vmem [thread:$0]  %s1, 512, %s170, [#allocation5], 128, 128, 8
        $region16: #{tpu_custom_call.1} parent=11 // pred_fallthru
          _
        // Predicated region
        $region17: #{tpu_custom_call.1} parent=11 // pred_check
          %p176 = pneg %p94
        $region18: #{tpu_custom_call.1} parent=11 // pred_check_branch
          %178 = sbr.rel (%p176) target = $region20
        $region19: #{tpu_custom_call.1} parent=11 // pred_region
          _
        $region20: #{tpu_custom_call.1} parent=11 // pred_fallthru
          _
      $region12: #{tpu_custom_call.1} parent=5 // pred_fallthru
        _
      %p179 = scmp.lt.s32.totalorder %s14, 6
      // Predicated region
      $region21: #{tpu_custom_call.1} parent=5 // pred_check
        %p180 = pneg %p179
      $region22: #{tpu_custom_call.1} parent=5 // pred_check_branch
        %182 = sbr.rel (%p180) target = $region24
      $region23: #{tpu_custom_call.1} parent=5 // pred_region
        // Predicated region
        $region25: #{tpu_custom_call.1} parent=23 // pred_check
          %p183 = pneg %p46
        $region26: #{tpu_custom_call.1} parent=23 // pred_check_branch
          %185 = sbr.rel (%p183) target = $region28
        $region27: #{tpu_custom_call.1} parent=23 // pred_region
          %p186 = scmp.lt.s32.totalorder %s22, 2
          %s187 = scalar_select %p186, %s22, 2
          %s188 = smul.addr %s187, 8
          %s189 = scalar_lea.vmem %s0, %s188
        $region28: #{tpu_custom_call.1} parent=23 // pred_fallthru
          _
        // Predicated region
        $region29: #{tpu_custom_call.1} parent=23 // pred_check
          %p190 = pneg %p114
        $region30: #{tpu_custom_call.1} parent=23 // pred_check_branch
          %192 = sbr.rel (%p190) target = $region32
        $region31: #{tpu_custom_call.1} parent=23 // pred_region
          %p193 = scmp.lt.s32.totalorder %s22, 2
          %s194 = scalar_select %p193, %s22, 2
          %s195 = smul.addr %s194, 8
          %s196 = scalar_lea.vmem %s3, %s195
        $region32: #{tpu_custom_call.1} parent=23 // pred_fallthru
          _
      $region24: #{tpu_custom_call.1} parent=5 // pred_fallthru
        _
      %p197 = scmp.le.s32.totalorder 1, %s14
      %p198 = scmp.lt.s32.totalorder %s14, 7
      %p199 = pnand %p197, %p198
      %p200 = pneg %p199
      // Predicated region
      $region33: #{tpu_custom_call.1} parent=5 // pred_check
        _
      $region34: #{tpu_custom_call.1} parent=5 // pred_check_branch
        %202 = sbr.rel (%p199) target = $region36
      $region35: #{tpu_custom_call.1} parent=5 // pred_region
        %s203 = ssub.s32 %s14, 1
        // Predicated region
        $region37: #{tpu_custom_call.1} parent=35 // pred_check
          %p204 = pneg %p73
        $region38: #{tpu_custom_call.1} parent=35 // pred_check_branch
          %206 = sbr.rel (%p204) target = $region40
        $region39: #{tpu_custom_call.1} parent=35 // pred_region
          %207 = dma.done [#allocation5], 512
        $region40: #{tpu_custom_call.1} parent=35 // pred_fallthru
          _
        %p208 = scmp.lt.s32.totalorder %s24, 2
        %s209 = scalar_select %p208, %s24, 2
        %s210 = smul.addr %s209, 8
        %s211 = scalar_lea.vmem %s0, %s210
        %p212 = pneg %p52
        %p213 = pneg %p49
        %p214 = pneg %p73
        %p215 = pneg %p70
        %p216 = pneg %p94
        %p217 = pneg %p91
        %p218 = scmp.lt.s32.totalorder %s24, 2
        %s219 = scalar_select %p218, %s24, 2
        %s220 = smul.addr %s219, 8
        %s221 = scalar_lea.vmem %s3, %s220
        %p222 = pneg %p120
        %p223 = pneg %p117
        %p224 = pneg %p148
        %p225 = pneg %p145
        %s226 = sand.u32 %s135, 1
        %s227 = scalar_lea.sflag [#allocation6], %s226
        %s228 = sand.u32 %s135, 1
        %s229 = smul.addr %s228, 8
        %s230 = scalar_lea.vmem [#allocation7], %s229
        %p231 = scmp.lt.s32.totalorder %s24, 2
        %s232 = scalar_select %p231, %s24, 2
        %s233 = smul.addr %s232, 8
        %s234 = scalar_lea.vmem %s0, %s233
        %p235 = scmp.lt.s32.totalorder %s24, 2
        %s236 = scalar_select %p235, %s24, 2
        %s237 = smul.addr %s236, 8
        %s238 = scalar_lea.vmem %s3, %s237
        %s239 = smul.u32 %s24, %s23
        %v240 = vld [vmem:[%s234] sm:$0xff]
        %v241 = vld [vmem:[#allocation4] sm:$0xff]
        %v242 = vld [vmem:[#allocation4 + $0x8] sm:$0xff]
        %v243 = vld [vmem:[#allocation4 + $0x10] sm:$0xff]
        %v244 = vld [vmem:[#allocation4 + $0x18] sm:$0xf]
        %vm245 = vcmask 228352
        %v247 = vsel %vm245, %v240, 0
        %vm249 = vcmask 1043456
        %v251 = vsel %vm249, %v244, 0
        %253 = vmatprep.subr.mxu0 0.0
        %254 = vmatpush1.msra.mxu0 0.0
        %255 = vmatprep.subr.mxu0 0.0
        %256 = vmatpush1.msra.mxu0 0.0
        %257 = vmatprep.subr.mxu0 0.0
        %258 = vmatpush1.msra.mxu0 0.0
        %259 = vmatprep.subr.mxu0 0.0
        %260 = vmatpush1.msra.mxu0 0.0
        %261 = vmatprep.subr.mxu0 0.0
        %262 = vmatpush1.msra.mxu0 0.0
        %263 = vmatprep.subr.mxu0 0.0
        %264 = vmatpush1.msra.mxu0 0.0
        %265 = vmatprep.subr.mxu0 0.0
        %266 = vmatpush1.msra.mxu0 0.0
        %267 = vmatprep.subr.mxu0 0.0
        %268 = vmatpush1.msra.mxu0 0.0
        %269 = vmatprep.subr.mxu0 0.0
        %270 = vmatpush1.msra.mxu0 0.0
        %271 = vmatprep.subr.mxu0 0.0
        %272 = vmatpush1.msra.mxu0 0.0
        %273 = vmatprep.subr.mxu0 0.0
        %274 = vmatpush1.msra.mxu0 0.0
        %275 = vmatprep.subr.mxu0 0.0
        %276 = vmatpush1.msra.mxu0 0.0
        %277 = vmatprep.subr.mxu0 0.0
        %278 = vmatpush1.msra.mxu0 %v251
        %279 = vmatprep.subr.mxu0 0.0
        %280 = vmatpush1.msra.mxu0 %v243
        %281 = vmatprep.subr.mxu0 0.0
        %282 = vmatpush1.msra.mxu0 %v242
        %283 = vmatprep.subr.mxu0 0.0
        %284 = vmatpush1.msra.mxu0 %v241
        %285 = vmatprep.subr.mxu0 0.0
        %286 = vmatpush2.msra.mxu0 0.0
        %287 = vmatprep.subr.mxu0 0.0
        %288 = vmatpush2.msra.mxu0 0.0
        %289 = vmatprep.subr.mxu0 0.0
        %290 = vmatpush2.msra.mxu0 0.0
        %291 = vmatprep.subr.mxu0 0.0
        %292 = vmatpush2.msra.mxu0 0.0
        %293 = vmatprep.subr.mxu0 0.0
        %294 = vmatpush2.msra.mxu0 0.0
        %295 = vmatprep.subr.mxu0 0.0
        %296 = vmatpush2.msra.mxu0 0.0
        %297 = vmatprep.subr.mxu0 0.0
        %298 = vmatpush2.msra.mxu0 0.0
        %299 = vmatprep.subr.mxu0 0.0
        %300 = vmatpush2.msra.mxu0 0.0
        %301 = vmatprep.subr.mxu0 0.0
        %302 = vmatpush2.msra.mxu0 0.0
        %303 = vmatprep.subr.mxu0 0.0
        %304 = vmatpush2.msra.mxu0 0.0
        %305 = vmatprep.subr.mxu0 0.0
        %306 = vmatpush2.msra.mxu0 0.0
        %307 = vmatprep.subr.mxu0 0.0
        %308 = vmatpush2.msra.mxu0 0.0
        %309 = vmatprep.subr.mxu0 0.0
        %310 = vmatpush2.msra.mxu0 0.0
        %311 = vmatprep.subr.mxu0 0.0
        %312 = vmatpush2.msra.mxu0 0.0
        %313 = vmatprep.subr.mxu0 0.0
        %314 = vmatpush2.msra.mxu0 0.0
        %315 = vmatprep.subr.mxu0 0.0
        %316 = vmatpush2.msra.mxu0 0.0
        %317 = vmatprep.mubr.f32.mxu0 0.0
        %318 = vmatmul.mubr.f32.gmra.mxu0 %v247
        %v319 = vpop.f32.mrf.mxu0
        %v320 = vadd.f32 0.0, %v319
        %v321 = vpop.f32.mrf.mxu0
        %322 = vdwg.mxu0
        %p323 = scmp.eq.s32.totalorder %s23, 0
        // Predicated region
        $region41: #{tpu_custom_call.1} parent=35 // pred_check
          %p324 = pneg %p323
        $region42: #{tpu_custom_call.1} parent=35 // pred_check_branch
          %326 = sbr.rel (%p324) target = $region44
        $region43: #{tpu_custom_call.1} parent=35 // pred_region
          %p327 = scmp.eq.s32.totalorder %s24, 0
          // Predicated region
          $region45: #{tpu_custom_call.1} parent=43 // pred_check
            %p328 = pneg %p327
          $region46: #{tpu_custom_call.1} parent=43 // pred_check_branch
            %330 = sbr.rel (%p328) target = $region48
          $region47: #{tpu_custom_call.1} parent=43 // pred_region
            %331 = vst [vmem:[#allocation2] sm:$0x1] 0.0
            %332 = vst [vmem:[#allocation3] sm:$0x1] 0.0
          $region48: #{tpu_custom_call.1} parent=43 // pred_fallthru
            _
          %v333 = vld [vmem:[%s2 + $0x3] sm:$0x1]
          %v334 = vsub.f32 1.0, %v333
          %v335 = vld [vmem:[%s238] sm:$0xff]
          %v336 = vlaneseq
          %v337 = vshrl.u32 %v336, 7
          %v338 = vsub.s32 0, %v337
          %v339 = vrot.slane %v334, %v338
          %341 = vset.pattern.permute.xlu0 0
          %342 = vperm.xlu0 %341, %v335
          %v343 = vpop.permute.xlu0 %342
          %v345 = vmul.f32 %v339, %v343
          %v346 = vlaneseq
          %v347 = vshrl.u32 %v346, 7
          %v348 = vsub.s32 0, %v347
          %v349 = vrot.slane %v333, %v348
          %v350 = vadd.f32 %v349, %v345
          %v351 = vmul.f32 %v320, %v350
          %v352 = vld [vmem:[#allocation2] sm:$0x1]
          %v353 = vrot.slane %v351, 4
          %v354 = vadd.f32 %v351, %v353
          %v355 = vrot.slane %v354, 2
          %v356 = vadd.f32 %v354, %v355
          %v357 = vrot.slane %v356, 1
          %v358 = vadd.f32 %v356, %v357
          %v359 = vadd.f32 %v352, %v358
          %360 = vst [vmem:[#allocation2] sm:$0x1] %v359
          %v361 = vld [vmem:[#allocation3] sm:$0x1]
          %v362 = vmul.f32 %v351, %v320
          %v363 = vrot.slane %v362, 4
          %v364 = vadd.f32 %v362, %v363
          %v365 = vrot.slane %v364, 2
          %v366 = vadd.f32 %v364, %v365
          %v367 = vrot.slane %v366, 1
          %v368 = vadd.f32 %v366, %v367
          %v369 = vadd.f32 %v361, %v368
          %370 = vst [vmem:[#allocation3] sm:$0x1] %v369
        $region44: #{tpu_custom_call.1} parent=35 // pred_fallthru
          _
        %p371 = scmp.eq.s32.totalorder %s23, 1
        // Predicated region
        $region49: #{tpu_custom_call.1} parent=35 // pred_check
          %p372 = pneg %p371
        $region50: #{tpu_custom_call.1} parent=35 // pred_check_branch
          %374 = sbr.rel (%p372) target = $region52
        $region51: #{tpu_custom_call.1} parent=35 // pred_region
          %p375 = scmp.eq.s32.totalorder %s24, 0
          // Predicated region
          $region53: #{tpu_custom_call.1} parent=51 // pred_check
            %p376 = pneg %p375
          $region54: #{tpu_custom_call.1} parent=51 // pred_check_branch
            %378 = sbr.rel (%p376) target = $region56
          $region55: #{tpu_custom_call.1} parent=51 // pred_region
            %v379 = vld [vmem:[%s2 + $0x2] sm:$0x1]
            %v380 = vld [vmem:[#allocation2] sm:$0x1]
            %v381 = vmul.f32 %v380, %v379
            %v382 = vld [vmem:[#allocation3] sm:$0x1]
            %v383 = vmul.f32 %v382, %v379
            %v384 = vmul.f32 %v381, %v381
            %v385 = vsub.f32 %v383, %v384
            %v386 = vmax.f32 %v385, 0.0
            %v387 = vld [vmem:[%s2] sm:$0x1]
            %v388 = vadd.f32 %v386, 1e-05
            %v389 = vrsqrt.pop %v388
            %v390 = vmul.f32 %v387, %v389
            %391 = vst [vmem:[#allocation2] sm:$0x1] %v390
            %v392 = vld [vmem:[%s2 + $0x1] sm:$0x1]
            %v393 = vmul.f32 %v381, %v390
            %v394 = vsub.f32 %v392, %v393
            %395 = vst [vmem:[#allocation3] sm:$0x1] %v394
          $region56: #{tpu_custom_call.1} parent=51 // pred_fallthru
            _
          %v396 = vld [vmem:[#allocation2] sm:$0x1]
          %v398 = vlaneseq
          %v399 = vshrl.u32 %v398, 7
          %v400 = vsub.s32 0, %v399
          %v401 = vrot.slane %v396, %v400
          %v403 = vmul.f32 %v320, %v401
          %v404 = vld [vmem:[#allocation3] sm:$0x1]
          %v406 = vlaneseq
          %v407 = vshrl.u32 %v406, 7
          %v408 = vsub.s32 0, %v407
          %v409 = vrot.slane %v404, %v408
          %v411 = vadd.f32 %v403, %v409
          %v412 = vmax.f32 %v411, 0.0
          %413 = vst [vmem:[%s230] sm:$0xff] %v412
        $region52: #{tpu_custom_call.1} parent=35 // pred_fallthru
          _
        %s414 = sand.u32 %s135, 1
        %s415 = scalar_lea.sflag [#allocation6], %s414
        %s416 = sand.u32 %s135, 1
        %s417 = smul.addr %s416, 8
        %s418 = scalar_lea.vmem [#allocation7], %s417
        // Predicated region
        $region57: #{tpu_custom_call.1} parent=35 // pred_check
          %p419 = pneg %p145
        $region58: #{tpu_custom_call.1} parent=35 // pred_check_branch
          %421 = sbr.rel (%p419) target = $region60
        $region59: #{tpu_custom_call.1} parent=35 // pred_region
          %s422 = smul.u32 %s24, %s23
          %s424 = ssub.s32 128, 128
          %425 = vsyncadd %s415, %s424
          %s426 = smul.addr %s422, 128
          %s427 = scalar_lea.hbm %s4, %s426
          %s429 = sshll.u32 %s418, 4
          %s430 = int_to_ptr.vmem [resolvable:$true] %s429
          %432 = dma.vmem_to_hbm [thread:$0]  %s430, 128, %s427, %s415
        $region60: #{tpu_custom_call.1} parent=35 // pred_fallthru
          _
      $region36: #{tpu_custom_call.1} parent=5 // pred_fallthru
        _
      %p433 = scmp.le.s32.totalorder 2, %s14
      // Predicated region
      $region61: #{tpu_custom_call.1} parent=5 // pred_check
        %p434 = pneg %p433
      $region62: #{tpu_custom_call.1} parent=5 // pred_check_branch
        %436 = sbr.rel (%p434) target = $region64
      $region63: #{tpu_custom_call.1} parent=5 // pred_region
        %s437 = ssub.s32 %s14, 2
        // Predicated region
        $region65: #{tpu_custom_call.1} parent=63 // pred_check
          %p438 = pneg %p151
        $region66: #{tpu_custom_call.1} parent=63 // pred_check_branch
          %440 = sbr.rel (%p438) target = $region68
        $region67: #{tpu_custom_call.1} parent=63 // pred_region
          %s441 = sand.u32 %s136, 1
          %s442 = scalar_lea.sflag [#allocation6], %s441
          %s443 = sand.u32 %s136, 1
          %s444 = smul.addr %s443, 8
          %s445 = scalar_lea.vmem [#allocation7], %s444
          %446 = dma.done %s442, 128
        $region68: #{tpu_custom_call.1} parent=63 // pred_fallthru
          _
      $region64: #{tpu_custom_call.1} parent=5 // pred_fallthru
        _
    $region6: #{tpu_custom_call.1} parent=1 // loop_footer
      %s18 = sadd.s32 1, %s14
    $region7: #{tpu_custom_call.1} parent=1 // loop_footer_branch
      %13 = sbr.rel target = $region3
    $region8: #{tpu_custom_call.1} parent=1 // loop_exit
      _
    %447 = vsyncpa [#allocation5], 1
    %s448 = scalar_lea.sflag [#allocation5], 1
    %449 = vsyncpa %s448, 1
    %450 = vsyncpa [#allocation6], 1
    %s451 = scalar_lea.sflag [#allocation6], 1
    %452 = vsyncpa %s451, 1

</llo_original>
